<compile_context>
chip_gen: v6e
topology: v6e:2x2x1
jax: 0.10.0
libtpu: 0.0.40
codegen_flags: <defaults>
</compile_context>

<pallas_src>
import functools

import jax
import jax.numpy as jnp
from jax.experimental import pallas as pl
from jax.experimental.pallas import tpu as pltpu

LANE = 128


def cse_kernel(x_ref, w1_ref, b1_ref, w2_ref, b2_ref, o_ref, acc_ref,
               *, inv_hw, hw, tile_hw, chunk, ragged):
    # x_ref  : (TILE_N, C, TILE_HW) input dtype -- streamed spatial tile of x
    # w1_ref : (C, C_half) f32     -- conv1 weight, BN scale folded, pre-transposed
    # b1_ref : (1, C_half) f32     -- folded BN bias 1
    # w2_ref : (C_half, C) f32     -- conv2 weight, BN scale folded, pre-transposed
    # b2_ref : (1, C) f32          -- folded BN bias 2
    # o_ref  : (TILE_N, C)         -- sigmoid gate (input dtype)
    # acc_ref: (TILE_N, C, chunk) f32 scratch -- lane-resident running spatial sum
    k = pl.program_id(1)
    last = pl.num_programs(1) - 1

    @pl.when(k == 0)
    def _():
        acc_ref[...] = jnp.zeros_like(acc_ref)

    n_chunks = tile_hw // chunk
    x = x_ref[...].astype(jnp.float32)       # upcast (no-op for f32, cheap for bf16)

    def accumulate(xt):
        # Steady-state = pure VPU adds; no per-step cross-lane (XLU) reduce.
        a = acc_ref[...]
        for c in range(n_chunks):
            a = a + xt[..., c * chunk:(c + 1) * chunk]
        acc_ref[...] = a

    if ragged:
        # Only the final HW tile is partial -> mask just that one; every other
        # step stays mask-free.
        @pl.when(k < last)
        def _():
            accumulate(x)

        @pl.when(k == last)
        def _():
            lane = jax.lax.broadcasted_iota(jnp.int32, x.shape, 2)
            valid = hw - k * tile_hw
            accumulate(jnp.where(lane < valid, x, 0.0))
    else:
        accumulate(x)

    @pl.when(k == last)
    def _():
        # Single cross-lane reduce + the two tiny 1x1-conv matmuls.
        pooled = jnp.sum(acc_ref[...], axis=-1) * inv_hw                  # (TILE_N, C)
        h = jnp.dot(pooled, w1_ref[...], preferred_element_type=jnp.float32)
        h = jnp.maximum(h + b1_ref[...], 0.0)                             # (TILE_N, C/2)
        y = jnp.dot(h, w2_ref[...], preferred_element_type=jnp.float32)
        o_ref[...] = jax.nn.sigmoid(y + b2_ref[...]).astype(o_ref.dtype)  # (TILE_N, C)


def cse_forward(x_nchw, w1, s1, b1, w2, s2, b2, *, tile_hw=None,
                vmem_limit_bytes=48 * 1024 * 1024,
                x_tile_budget_bytes=8 * 1024 * 1024):
    N, C, H, W = x_nchw.shape
    hw = H * W
    c_half = w1.shape[0]

    # Fold BN scales into the conv weights and pre-transpose (host side, free).
    w1_eff = (w1 * s1[:, None]).T.astype(jnp.float32)                 # (C, C_half)
    w2_eff = (w2 * s2[:, None]).T.astype(jnp.float32)                 # (C_half, C)
    b1_row = b1.reshape(1, c_half).astype(jnp.float32)
    b2_row = b2.reshape(1, C).astype(jnp.float32)

    # ---- batch tiling ----------------------------------------------------
    # Output block sublane dim must be a multiple of 8 or the full batch.
    # tile_n = 8 for N > 8 gives >= 2 "parallel" blocks (v7x megacore) and a
    # bounded per-step DMA; ragged last batch block is plain Pallas edge
    # clipping (garbage rows never mix across rows and their writes are dropped).
    tile_n = 8 if N > 8 else N
    n_blocks = pl.cdiv(N, tile_n)

    # ---- HW tiling ---------------------------------------------------------
    # No host-side jnp.pad (that would re-read/write all of x in HBM).
    # tile_hw is either a 128-lane multiple (< hw, ragged tail masked
    # in-kernel) or exactly the full spatial extent.
    bytes_per = jnp.dtype(x_nchw.dtype).itemsize
    row_bytes = tile_n * C * bytes_per
    max_hw_by_budget = max(LANE, (x_tile_budget_bytes // max(row_bytes, 1)) // LANE * LANE)

    if tile_hw is None:
        if hw * row_bytes <= x_tile_budget_bytes:
            tile_hw = hw                                    # one spatial step
        else:
            tile_hw = min(2048, max_hw_by_budget)
    else:
        tile_hw = max(LANE, min(tile_hw, max_hw_by_budget) // LANE * LANE)
    if tile_hw >= hw:
        tile_hw = hw

    chunk = LANE if tile_hw % LANE == 0 else tile_hw
    ragged = (hw % tile_hw) != 0
    hw_blocks = pl.cdiv(hw, tile_hw)

    # Stream x in its native dtype (bf16 halves HBM traffic); f32 accumulation.
    x3 = x_nchw.reshape(N, C, hw)

    kernel = functools.partial(
        cse_kernel, inv_hw=1.0 / float(hw), hw=hw, tile_hw=tile_hw,
        chunk=chunk, ragged=ragged)

    out = pl.pallas_call(
        kernel,
        out_shape=jax.ShapeDtypeStruct((N, C), x_nchw.dtype),
        grid_spec=pltpu.PrefetchScalarGridSpec(
            num_scalar_prefetch=0,
            grid=(n_blocks, hw_blocks),
            in_specs=[
                pl.BlockSpec((tile_n, C, tile_hw), lambda n, k: (n, 0, k)),
                pl.BlockSpec((C, c_half), lambda n, k: (0, 0)),
                pl.BlockSpec((1, c_half), lambda n, k: (0, 0)),
                pl.BlockSpec((c_half, C), lambda n, k: (0, 0)),
                pl.BlockSpec((1, C), lambda n, k: (0, 0)),
            ],
            out_specs=pl.BlockSpec((tile_n, C), lambda n, k: (n, 0)),
            scratch_shapes=[pltpu.VMEM((tile_n, C, chunk), jnp.float32)],
        ),
        compiler_params=pltpu.CompilerParams(
            dimension_semantics=("parallel", "arbitrary"),
            vmem_limit_bytes=vmem_limit_bytes,
        ),
    )(x3, w1_eff, b1_row, w2_eff, b2_row)

    # Back to PyTorch output shape (N, C, 1, 1).
    return out.reshape(N, C, 1, 1)


def fold_bn(gamma, beta, running_mean, running_var, eps=1e-5):
    scale = gamma / jnp.sqrt(running_var + eps)
    bias = beta - running_mean * scale
    return scale, bias


def reference(x_nchw, w1, s1, b1, w2, s2, b2):
    pooled = jnp.mean(x_nchw.astype(jnp.float32), axis=(2, 3))        # (N, C)
    h = pooled @ w1.T
    h = jnp.maximum(h * s1 + b1, 0.0)
    y = h @ w2.T
    y = jax.nn.sigmoid(y * s2 + b2)
    return y.reshape(*y.shape, 1, 1)


if __name__ == "__main__":
    N, C, H, W = 2, 4, 16, 16
    C_half = C // 2

    key = jax.random.PRNGKey(0)
    kx, kw1, kw2, kg1, kb1, km1, kv1, kg2, kb2, km2, kv2 = jax.random.split(key, 11)

    x = jax.random.normal(kx, (N, C, H, W), dtype=jnp.float32)

    # Conv1x1 weights (no bias), PyTorch (out_ch, in_ch, 1, 1) -> (out_ch, in_ch).
    w1 = jax.random.normal(kw1, (C_half, C), dtype=jnp.float32) * 0.5
    w2 = jax.random.normal(kw2, (C, C_half), dtype=jnp.float32) * 0.5

    # BatchNorm params (inference / folded).
    g1 = 1.0 + 0.1 * jax.random.normal(kg1, (C_half,), dtype=jnp.float32)
    be1 = 0.1 * jax.random.normal(kb1, (C_half,), dtype=jnp.float32)
    m1 = 0.1 * jax.random.normal(km1, (C_half,), dtype=jnp.float32)
    v1 = 1.0 + 0.1 * jnp.abs(jax.random.normal(kv1, (C_half,), dtype=jnp.float32))
    g2 = 1.0 + 0.1 * jax.random.normal(kg2, (C,), dtype=jnp.float32)
    be2 = 0.1 * jax.random.normal(kb2, (C,), dtype=jnp.float32)
    m2 = 0.1 * jax.random.normal(km2, (C,), dtype=jnp.float32)
    v2 = 1.0 + 0.1 * jnp.abs(jax.random.normal(kv2, (C,), dtype=jnp.float32))

    s1, b1 = fold_bn(g1, be1, m1, v1)
    s2, b2 = fold_bn(g2, be2, m2, v2)

    ref = reference(x, w1, s1, b1, w2, s2, b2)

    # 1) Auto tiling: full spatial extent in one step, chunked VPU accumulation.
    out = jax.block_until_ready(cse_forward(x, w1, s1, b1, w2, s2, b2))
    assert out.shape == (N, C, 1, 1), out.shape
    assert jnp.allclose(out, ref, atol=2e-5, rtol=1e-4), "auto-tile mismatch"

    # 2) Forced small tile: multi-step accumulation path (HW divides tile).
    out2 = jax.block_until_ready(cse_forward(x, w1, s1, b1, w2, s2, b2, tile_hw=128))
    assert jnp.allclose(out2, ref, atol=2e-5, rtol=1e-4), "multi-tile mismatch"

    # 3) Ragged spatial extent: in-kernel mask of the partial last HW tile (no pad).
    x_r = jax.random.normal(kx, (N, C, 14, 10), dtype=jnp.float32)
    out3 = jax.block_until_ready(cse_forward(x_r, w1, s1, b1, w2, s2, b2, tile_hw=128))
    ref3 = reference(x_r, w1, s1, b1, w2, s2, b2)
    assert jnp.allclose(out3, ref3, atol=2e-5, rtol=1e-4), "ragged-tile mismatch"

    # 4) bf16 streaming of x (halved HBM traffic); accumulation stays f32.
    x_bf = x.astype(jnp.bfloat16)
    out4 = jax.block_until_ready(cse_forward(x_bf, w1, s1, b1, w2, s2, b2, tile_hw=128))
    ref4 = reference(x_bf.astype(jnp.float32), w1, s1, b1, w2, s2, b2)
    assert jnp.allclose(out4.astype(jnp.float32), ref4, atol=1e-2, rtol=1e-2), "bf16 mismatch"

    print("KERNEL_OK")
</pallas_src>

<mosaic_0001>
module attributes {stable_mosaic.version = 11 : i64} {
  func.func @cse_kernel(%arg0: i32, %arg1: i32, %arg2: memref<2x4x256xf32, #tpu.memory_space<vmem>>, %arg3: memref<4x2xf32, #tpu.memory_space<vmem>>, %arg4: memref<1x2xf32, #tpu.memory_space<vmem>>, %arg5: memref<2x4xf32, #tpu.memory_space<vmem>>, %arg6: memref<1x4xf32, #tpu.memory_space<vmem>>, %arg7: memref<2x4xf32, #tpu.memory_space<vmem>>, %arg8: memref<2x4x128xf32, #tpu.memory_space<vmem>>) attributes {dimension_semantics = [#tpu.dimension_semantics<parallel>, #tpu.dimension_semantics<arbitrary>], iteration_bounds = array<i64: 1, 1>, scalar_prefetch = 0 : i64, scratch_operands = 1 : i64, tpu.core_type = #tpu.core_type<tc>, window_params = [{transform_indices = @transform_0, window_bounds = array<i64: 2, 4, 256>}, {pipeline_mode = #tpu.pipeline_mode<synchronous>, transform_indices = @transform_1, window_bounds = array<i64: 4, 2>}, {pipeline_mode = #tpu.pipeline_mode<synchronous>, transform_indices = @transform_2, window_bounds = array<i64: 1, 2>}, {pipeline_mode = #tpu.pipeline_mode<synchronous>, transform_indices = @transform_3, window_bounds = array<i64: 2, 4>}, {pipeline_mode = #tpu.pipeline_mode<synchronous>, transform_indices = @transform_4, window_bounds = array<i64: 1, 4>}, {transform_indices = @transform_5, window_bounds = array<i64: 2, 4>}]} {
    %c0_i32 = arith.constant 0 : i32
    %0 = arith.cmpi eq, %arg1, %c0_i32 : i32
    %1 = arith.extui %0 : i1 to i32
    %c0_i32_0 = arith.constant 0 : i32
    %2 = arith.cmpi ne, %1, %c0_i32_0 : i32
    scf.if %2 {
      %cst = arith.constant 0.000000e+00 : f32
      %13 = vector.broadcast %cst : f32 to vector<2x4x128xf32>
      %c0_11 = arith.constant 0 : index
      %c0_12 = arith.constant 0 : index
      %c0_13 = arith.constant 0 : index
      %14 = vector.load %arg8[%c0_11, %c0_12, %c0_13] : memref<2x4x128xf32, #tpu.memory_space<vmem>>, vector<2x4x128xf32>
      tpu.vector_store %arg8[%c0_11, %c0_12, %c0_13], %13 {strides = array<i32>} : memref<2x4x128xf32, #tpu.memory_space<vmem>>, vector<2x4x128xf32>,
    } else {
    }
    %c0 = arith.constant 0 : index
    %c0_1 = arith.constant 0 : index
    %c0_2 = arith.constant 0 : index
    %3 = vector.load %arg2[%c0, %c0_1, %c0_2] : memref<2x4x256xf32, #tpu.memory_space<vmem>>, vector<2x4x256xf32>
    %c0_3 = arith.constant 0 : index
    %c0_4 = arith.constant 0 : index
    %c0_5 = arith.constant 0 : index
    %4 = vector.load %arg8[%c0_3, %c0_4, %c0_5] : memref<2x4x128xf32, #tpu.memory_space<vmem>>, vector<2x4x128xf32>
    %5 = vector.extract_strided_slice %3 {offsets = [0, 0, 0], sizes = [2, 4, 128], strides = [1, 1, 1]} : vector<2x4x256xf32> to vector<2x4x128xf32>
    %6 = arith.addf %4, %5 : vector<2x4x128xf32>
    %7 = vector.extract_strided_slice %3 {offsets = [0, 0, 128], sizes = [2, 4, 128], strides = [1, 1, 1]} : vector<2x4x256xf32> to vector<2x4x128xf32>
    %8 = arith.addf %6, %7 : vector<2x4x128xf32>
    %c0_6 = arith.constant 0 : index
    %c0_7 = arith.constant 0 : index
    %c0_8 = arith.constant 0 : index
    %9 = vector.load %arg8[%c0_6, %c0_7, %c0_8] : memref<2x4x128xf32, #tpu.memory_space<vmem>>, vector<2x4x128xf32>
    tpu.vector_store %arg8[%c0_6, %c0_7, %c0_8], %8 {strides = array<i32>} : memref<2x4x128xf32, #tpu.memory_space<vmem>>, vector<2x4x128xf32>,
    %c0_i32_9 = arith.constant 0 : i32
    %10 = arith.cmpi eq, %arg1, %c0_i32_9 : i32
    %11 = arith.extui %10 : i1 to i32
    %c0_i32_10 = arith.constant 0 : i32
    %12 = arith.cmpi ne, %11, %c0_i32_10 : i32
    scf.if %12 {
      %c0_11 = arith.constant 0 : index
      %c0_12 = arith.constant 0 : index
      %c0_13 = arith.constant 0 : index
      %13 = vector.load %arg8[%c0_11, %c0_12, %c0_13] : memref<2x4x128xf32, #tpu.memory_space<vmem>>, vector<2x4x128xf32>
      %cst = arith.constant dense<0.000000e+00> : vector<2x4xf32>
      %14 = vector.multi_reduction <add>, %13, %cst [2] : vector<2x4x128xf32> to vector<2x4xf32>
      %cst_14 = arith.constant 3.906250e-03 : f32
      %15 = vector.broadcast %cst_14 : f32 to vector<2x4xf32>
      %16 = arith.mulf %14, %15 : vector<2x4xf32>
      %c0_15 = arith.constant 0 : index
      %c0_16 = arith.constant 0 : index
      %17 = vector.load %arg3[%c0_15, %c0_16] : memref<4x2xf32, #tpu.memory_space<vmem>>, vector<4x2xf32>
      %cst_17 = arith.constant dense<0.000000e+00> : vector<2x2xf32>
      %18 = tpu.matmul %16, %17, %cst_17 {dimension_numbers = #tpu.dot_dimension_numbers<[1], [0], [0], [1], [0, 0, 1, 1], [], []>} : vector<2x4xf32>, vector<4x2xf32>, vector<2x2xf32> -> vector<2x2xf32>
      %c0_18 = arith.constant 0 : index
      %c0_19 = arith.constant 0 : index
      %19 = vector.load %arg4[%c0_18, %c0_19] : memref<1x2xf32, #tpu.memory_space<vmem>>, vector<1x2xf32>
      %20 = vector.broadcast %19 : vector<1x2xf32> to vector<2x2xf32>
      %21 = arith.addf %18, %20 : vector<2x2xf32>
      %cst_20 = arith.constant 0.000000e+00 : f32
      %22 = vector.broadcast %cst_20 : f32 to vector<2x2xf32>
      %23 = arith.maximumf %21, %22 : vector<2x2xf32>
      %c0_21 = arith.constant 0 : index
      %c0_22 = arith.constant 0 : index
      %24 = vector.load %arg5[%c0_21, %c0_22] : memref<2x4xf32, #tpu.memory_space<vmem>>, vector<2x4xf32>
      %cst_23 = arith.constant dense<0.000000e+00> : vector<2x4xf32>
      %25 = tpu.matmul %23, %24, %cst_23 {dimension_numbers = #tpu.dot_dimension_numbers<[1], [0], [0], [1], [0, 0, 1, 1], [], []>} : vector<2x2xf32>, vector<2x4xf32>, vector<2x4xf32> -> vector<2x4xf32>
      %c0_24 = arith.constant 0 : index
      %c0_25 = arith.constant 0 : index
      %26 = vector.load %arg6[%c0_24, %c0_25] : memref<1x4xf32, #tpu.memory_space<vmem>>, vector<1x4xf32>
      %27 = vector.broadcast %26 : vector<1x4xf32> to vector<2x4xf32>
      %28 = arith.addf %25, %27 : vector<2x4xf32>
      %29 = arith.negf %28 : vector<2x4xf32>
      %30 = math.exp %29 : vector<2x4xf32>
      %cst_26 = arith.constant 1.000000e+00 : f32
      %31 = vector.broadcast %cst_26 : f32 to vector<2x4xf32>
      %32 = arith.addf %31, %30 : vector<2x4xf32>
      %33 = arith.divf %31, %32 : vector<2x4xf32>
      %c0_27 = arith.constant 0 : index
      %c0_28 = arith.constant 0 : index
      %34 = vector.load %arg7[%c0_27, %c0_28] : memref<2x4xf32, #tpu.memory_space<vmem>>, vector<2x4xf32>
      tpu.vector_store %arg7[%c0_27, %c0_28], %33 {strides = array<i32>} : memref<2x4xf32, #tpu.memory_space<vmem>>, vector<2x4xf32>,
    } else {
    }
    return
  }
  func.func @transform_0(%arg0: i32, %arg1: i32) -> (i32, i32, i32) {
    %c0_i32 = arith.constant 0 : i32
    %c0_i32_0 = arith.constant 0 : i32
    return %arg0, %c0_i32, %arg1 : i32, i32, i32
  }
  func.func @transform_1(%arg0: i32, %arg1: i32) -> (i32, i32) {
    %c0_i32 = arith.constant 0 : i32
    %c0_i32_0 = arith.constant 0 : i32
    %c0_i32_1 = arith.constant 0 : i32
    return %c0_i32, %c0_i32_0 : i32, i32
  }
  func.func @transform_2(%arg0: i32, %arg1: i32) -> (i32, i32) {
    %c0_i32 = arith.constant 0 : i32
    %c0_i32_0 = arith.constant 0 : i32
    %c0_i32_1 = arith.constant 0 : i32
    return %c0_i32, %c0_i32_0 : i32, i32
  }
  func.func @transform_3(%arg0: i32, %arg1: i32) -> (i32, i32) {
    %c0_i32 = arith.constant 0 : i32
    %c0_i32_0 = arith.constant 0 : i32
    %c0_i32_1 = arith.constant 0 : i32
    return %c0_i32, %c0_i32_0 : i32, i32
  }
  func.func @transform_4(%arg0: i32, %arg1: i32) -> (i32, i32) {
    %c0_i32 = arith.constant 0 : i32
    %c0_i32_0 = arith.constant 0 : i32
    %c0_i32_1 = arith.constant 0 : i32
    return %c0_i32, %c0_i32_0 : i32, i32
  }
  func.func @transform_5(%arg0: i32, %arg1: i32) -> (i32, i32) {
    %c0_i32 = arith.constant 0 : i32
    %c0_i32_0 = arith.constant 0 : i32
    return %arg0, %c0_i32 : i32, i32
  }
}

</mosaic_0001>

<llo_original>
// kernel: tpu_custom_call.1
$region0: #{tpu_custom_call.1}
  #allocation0 [shape = 'u32[]', space=smem, size = 0x4, offset = 0x4, fixed_abs, tag = 'smem constant byte address 0x4 - core index']
  #allocation1 [shape = 'u32[144,128]{1,0:T(1,128)}', space=vmem, size = 0x12000, scoped, tag = 'internal scratch']
  #allocation2 [shape = 'f32[2,4,128]{2,1,0:T(4,128)}', space=vmem, size = 0x1000, scoped, tag = 'scratch operand']
  %s0 = inlined_call_operand.hbm [shape: f32[2,4,256], index: 0, kind: input, shape index: {}]
  %s1 = inlined_call_operand.vmem [shape: f32[4,2], index: 1, kind: input, shape index: {}]
  %s2 = inlined_call_operand.vmem [shape: f32[1,2], index: 2, kind: input, shape index: {}]
  %s3 = inlined_call_operand.vmem [shape: f32[2,4], index: 3, kind: input, shape index: {}]
  %s4 = inlined_call_operand.vmem [shape: f32[1,4], index: 4, kind: input, shape index: {}]
  %s5 = inlined_call_operand.hbm [shape: f32[2,4], index: 5, kind: output, shape index: {}]
  %s6 = sld [smem:[#allocation0]]
  $region42: #{tpu_custom_call.1} parent=0
    _
  %s8 = ssub.s32 1, %s6
  %s9 = scalar_select 0, %s8, %s6
  $region1: #{tpu_custom_call.1} parent=0
    #allocation3 [shape = 'u8[8192]{0}', space=vmem, size = 0x2000, scoped, tag = 'input window, operand 0, single buffered']
    #allocation4 [shape = 's32[1]{0}', space=sflag, size = 0x4, scoped, tag = 'scoped memory for tpu_custom_call.1']
    #allocation5 [shape = 's32[1]{0}', space=sflag, size = 0x4, scoped, tag = 'scoped memory for tpu_custom_call.1']
    #allocation6 [shape = 'u8[1024]{0}', space=vmem, size = 0x400, scoped, tag = 'output window, operand 0, single buffered']
    %10 = vsyncpa [#allocation4], 0
    %11 = vsyncpa [#allocation5], 0
    // Predicated region
    $region2: #{tpu_custom_call.1} parent=1 // pred_check
      _
    $region3: #{tpu_custom_call.1} parent=1 // pred_check_branch
      %13 = sbr.rel (0) target = $region5
    $region4: #{tpu_custom_call.1} parent=1 // pred_region
      %s15 = ssub.s32 256, 256
      %16 = vsyncadd [#allocation4], %s15
      %s17 = sshll.u32 [#allocation3], 4
      %s18 = int_to_ptr.vmem [resolvable:$true] %s17
      %23 = dma.hbm_to_vmem [thread:$0]  %s0, 256, %s18, [#allocation4], 128, 128, 8
    $region5: #{tpu_custom_call.1} parent=1 // pred_fallthru
      _
    // Predicated region
    $region6: #{tpu_custom_call.1} parent=1 // pred_check
      _
    $region7: #{tpu_custom_call.1} parent=1 // pred_check_branch
      %25 = sbr.rel (0) target = $region9
    $region8: #{tpu_custom_call.1} parent=1 // pred_region
      _
    $region9: #{tpu_custom_call.1} parent=1 // pred_fallthru
      _
    // Predicated region
    $region10: #{tpu_custom_call.1} parent=1 // pred_check
      _
    $region11: #{tpu_custom_call.1} parent=1 // pred_check_branch
      %27 = sbr.rel (0) target = $region13
    $region12: #{tpu_custom_call.1} parent=1 // pred_region
      _
    $region13: #{tpu_custom_call.1} parent=1 // pred_fallthru
      _
    // Predicated region
    $region14: #{tpu_custom_call.1} parent=1 // pred_check
      _
    $region15: #{tpu_custom_call.1} parent=1 // pred_check_branch
      %29 = sbr.rel (0) target = $region17
    $region16: #{tpu_custom_call.1} parent=1 // pred_region
      _
    $region17: #{tpu_custom_call.1} parent=1 // pred_fallthru
      _
    // Predicated region
    $region18: #{tpu_custom_call.1} parent=1 // pred_check
      _
    $region19: #{tpu_custom_call.1} parent=1 // pred_check_branch
      %31 = sbr.rel (0) target = $region21
    $region20: #{tpu_custom_call.1} parent=1 // pred_region
      _
    $region21: #{tpu_custom_call.1} parent=1 // pred_fallthru
      _
    // Predicated region
    $region22: #{tpu_custom_call.1} parent=1 // pred_check
      _
    $region23: #{tpu_custom_call.1} parent=1 // pred_check_branch
      %33 = sbr.rel (0) target = $region25
    $region24: #{tpu_custom_call.1} parent=1 // pred_region
      %34 = dma.done [#allocation4], 256
    $region25: #{tpu_custom_call.1} parent=1 // pred_fallthru
      _
    %p35 = scmp.eq.s32.totalorder 0, 0
    // Predicated region
    $region26: #{tpu_custom_call.1} parent=1 // pred_check
      %p36 = pneg %p35
    $region27: #{tpu_custom_call.1} parent=1 // pred_check_branch
      %38 = sbr.rel (%p36) target = $region29
    $region28: #{tpu_custom_call.1} parent=1 // pred_region
      %39 = vst [vmem:[#allocation2] sm:$0xf] 0.0
      %40 = vst [vmem:[#allocation2 + $0x4] sm:$0xf] 0.0
    $region29: #{tpu_custom_call.1} parent=1 // pred_fallthru
      _
    %v41 = vld [vmem:[#allocation3] sm:$0xff]
    %v42 = vld [vmem:[#allocation3 + $0x8] sm:$0xff]
    %v43 = vld [vmem:[#allocation2] sm:$0xf]
    %v44 = vld [vmem:[#allocation2 + $0x4] sm:$0xf]
    %v45 = vadd.f32 %v43, %v41
    %v46 = vadd.f32 %v44, %v42
    %v49 = vcombine.high %v41, %v41
    %v50 = vcombine.high %v42, %v42
    %v53 = vadd.f32 %v45, %v49
    %v54 = vadd.f32 %v46, %v50
    %55 = vst [vmem:[#allocation2] sm:$0xf] %v53
    %56 = vst [vmem:[#allocation2 + $0x4] sm:$0xf] %v54
    // Predicated region
    $region30: #{tpu_custom_call.1} parent=1 // pred_check
      %p57 = pneg %p35
    $region31: #{tpu_custom_call.1} parent=1 // pred_check_branch
      %59 = sbr.rel (%p57) target = $region33
    $region32: #{tpu_custom_call.1} parent=1 // pred_region
      %v60 = vld [vmem:[#allocation2] sm:$0xf]
      %v61 = vld [vmem:[#allocation2 + $0x4] sm:$0xf]
      %vm62 = vcmask 1043456
      %v63 = vsel %vm62, %v60, 0.0
      %64 = vadd.xlane.f32.xlu0 %v63
      %v65 = vpop.xlane.xlu0 %64
      %v66 = vsel %vm62, %v61, 0.0
      %67 = vadd.xlane.f32.xlu0 %v66
      %v68 = vpop.xlane.xlu0 %67
      %v69 = vmul.f32 %v65, 0.00390625
      %v70 = vmul.f32 %v68, 0.00390625
      %v71 = vld [vmem:[%s1] sm:$0xf]
      %v72 = vld [vmem:[%s2] sm:$0x1]
      %v74 = vlaneseq
      %v75 = vshrl.u32 %v74, 7
      %v76 = vsub.s32 0, %v75
      %v77 = vrot.slane %v72, %v76
      %v81 = vlaneseq
      %v82 = vand.u32 %v81, 127
      %v83 = vlaneseq
      %v84 = vshrl.u32 %v83, 7
      %v85 = vsub.s32 %v82, %v84
      %v86 = vrot.slane %v69, %v85
      %v87 = vlaneseq
      %v88 = vshrl.u32 %v87, 7
      %v89 = vsub.s32 %v82, %v88
      %v90 = vrot.slane %v70, %v89
      %vm91 = vcmask 1041409
      %v92 = vsel %vm91, %v90, %v86
      %vm93 = vcmask 31744
      %v94 = vsel %vm93, %v92, 0
      %v97 = vsel %vm62, %v71, 0
      %99 = vmatprep.subr.mxu0 0.0
      %100 = vmatpush1.msra.mxu0 0.0
      %101 = vmatprep.subr.mxu0 0.0
      %102 = vmatpush1.msra.mxu0 0.0
      %103 = vmatprep.subr.mxu0 0.0
      %104 = vmatpush1.msra.mxu0 0.0
      %105 = vmatprep.subr.mxu0 0.0
      %106 = vmatpush1.msra.mxu0 0.0
      %107 = vmatprep.subr.mxu0 0.0
      %108 = vmatpush1.msra.mxu0 0.0
      %109 = vmatprep.subr.mxu0 0.0
      %110 = vmatpush1.msra.mxu0 0.0
      %111 = vmatprep.subr.mxu0 0.0
      %112 = vmatpush1.msra.mxu0 0.0
      %113 = vmatprep.subr.mxu0 0.0
      %114 = vmatpush1.msra.mxu0 0.0
      %115 = vmatprep.subr.mxu0 0.0
      %116 = vmatpush1.msra.mxu0 0.0
      %117 = vmatprep.subr.mxu0 0.0
      %118 = vmatpush1.msra.mxu0 0.0
      %119 = vmatprep.subr.mxu0 0.0
      %120 = vmatpush1.msra.mxu0 0.0
      %121 = vmatprep.subr.mxu0 0.0
      %122 = vmatpush1.msra.mxu0 0.0
      %123 = vmatprep.subr.mxu0 0.0
      %124 = vmatpush1.msra.mxu0 0.0
      %125 = vmatprep.subr.mxu0 0.0
      %126 = vmatpush1.msra.mxu0 0.0
      %127 = vmatprep.subr.mxu0 0.0
      %128 = vmatpush1.msra.mxu0 0.0
      %129 = vmatprep.subr.mxu0 0.0
      %130 = vmatpush1.msra.mxu0 %v97
      %131 = vmatprep.subr.mxu0 0.0
      %132 = vmatpush2.msra.mxu0 0.0
      %133 = vmatprep.subr.mxu0 0.0
      %134 = vmatpush2.msra.mxu0 0.0
      %135 = vmatprep.subr.mxu0 0.0
      %136 = vmatpush2.msra.mxu0 0.0
      %137 = vmatprep.subr.mxu0 0.0
      %138 = vmatpush2.msra.mxu0 0.0
      %139 = vmatprep.subr.mxu0 0.0
      %140 = vmatpush2.msra.mxu0 0.0
      %141 = vmatprep.subr.mxu0 0.0
      %142 = vmatpush2.msra.mxu0 0.0
      %143 = vmatprep.subr.mxu0 0.0
      %144 = vmatpush2.msra.mxu0 0.0
      %145 = vmatprep.subr.mxu0 0.0
      %146 = vmatpush2.msra.mxu0 0.0
      %147 = vmatprep.subr.mxu0 0.0
      %148 = vmatpush2.msra.mxu0 0.0
      %149 = vmatprep.subr.mxu0 0.0
      %150 = vmatpush2.msra.mxu0 0.0
      %151 = vmatprep.subr.mxu0 0.0
      %152 = vmatpush2.msra.mxu0 0.0
      %153 = vmatprep.subr.mxu0 0.0
      %154 = vmatpush2.msra.mxu0 0.0
      %155 = vmatprep.subr.mxu0 0.0
      %156 = vmatpush2.msra.mxu0 0.0
      %157 = vmatprep.subr.mxu0 0.0
      %158 = vmatpush2.msra.mxu0 0.0
      %159 = vmatprep.subr.mxu0 0.0
      %160 = vmatpush2.msra.mxu0 0.0
      %161 = vmatprep.subr.mxu0 0.0
      %162 = vmatpush2.msra.mxu0 0.0
      %163 = vmatprep.mubr.f32.mxu0 0.0
      %164 = vmatmul.mubr.f32.gmra.mxu0 %v94
      %v165 = vpop.f32.mrf.mxu0
      %v166 = vadd.f32 %v77, %v165
      %v167 = vpop.f32.mrf.mxu0
      %168 = vdwg.mxu0
      %v169 = vmax.f32 %v166, 0.0
      %v170 = vld [vmem:[%s3] sm:$0x3]
      %v171 = vld [vmem:[%s4] sm:$0x1]
      %v173 = vlaneseq
      %v174 = vshrl.u32 %v173, 7
      %v175 = vsub.s32 0, %v174
      %v176 = vrot.slane %v171, %v175
      %vm178 = vcmask 15360
      %v180 = vsel %vm178, %v169, 0
      %vm182 = vcmask 1041408
      %v184 = vsel %vm182, %v170, 0
      %186 = vmatprep.subr.mxu0 0.0
      %187 = vmatpush1.msra.mxu0 0.0
      %188 = vmatprep.subr.mxu0 0.0
      %189 = vmatpush1.msra.mxu0 0.0
      %190 = vmatprep.subr.mxu0 0.0
      %191 = vmatpush1.msra.mxu0 0.0
      %192 = vmatprep.subr.mxu0 0.0
      %193 = vmatpush1.msra.mxu0 0.0
      %194 = vmatprep.subr.mxu0 0.0
      %195 = vmatpush1.msra.mxu0 0.0
      %196 = vmatprep.subr.mxu0 0.0
      %197 = vmatpush1.msra.mxu0 0.0
      %198 = vmatprep.subr.mxu0 0.0
      %199 = vmatpush1.msra.mxu0 0.0
      %200 = vmatprep.subr.mxu0 0.0
      %201 = vmatpush1.msra.mxu0 0.0
      %202 = vmatprep.subr.mxu0 0.0
      %203 = vmatpush1.msra.mxu0 0.0
      %204 = vmatprep.subr.mxu0 0.0
      %205 = vmatpush1.msra.mxu0 0.0
      %206 = vmatprep.subr.mxu0 0.0
      %207 = vmatpush1.msra.mxu0 0.0
      %208 = vmatprep.subr.mxu0 0.0
      %209 = vmatpush1.msra.mxu0 0.0
      %210 = vmatprep.subr.mxu0 0.0
      %211 = vmatpush1.msra.mxu0 0.0
      %212 = vmatprep.subr.mxu0 0.0
      %213 = vmatpush1.msra.mxu0 0.0
      %214 = vmatprep.subr.mxu0 0.0
      %215 = vmatpush1.msra.mxu0 0.0
      %216 = vmatprep.subr.mxu0 0.0
      %217 = vmatpush1.msra.mxu0 %v184
      %218 = vmatprep.subr.mxu0 0.0
      %219 = vmatpush2.msra.mxu0 0.0
      %220 = vmatprep.subr.mxu0 0.0
      %221 = vmatpush2.msra.mxu0 0.0
      %222 = vmatprep.subr.mxu0 0.0
      %223 = vmatpush2.msra.mxu0 0.0
      %224 = vmatprep.subr.mxu0 0.0
      %225 = vmatpush2.msra.mxu0 0.0
      %226 = vmatprep.subr.mxu0 0.0
      %227 = vmatpush2.msra.mxu0 0.0
      %228 = vmatprep.subr.mxu0 0.0
      %229 = vmatpush2.msra.mxu0 0.0
      %230 = vmatprep.subr.mxu0 0.0
      %231 = vmatpush2.msra.mxu0 0.0
      %232 = vmatprep.subr.mxu0 0.0
      %233 = vmatpush2.msra.mxu0 0.0
      %234 = vmatprep.subr.mxu0 0.0
      %235 = vmatpush2.msra.mxu0 0.0
      %236 = vmatprep.subr.mxu0 0.0
      %237 = vmatpush2.msra.mxu0 0.0
      %238 = vmatprep.subr.mxu0 0.0
      %239 = vmatpush2.msra.mxu0 0.0
      %240 = vmatprep.subr.mxu0 0.0
      %241 = vmatpush2.msra.mxu0 0.0
      %242 = vmatprep.subr.mxu0 0.0
      %243 = vmatpush2.msra.mxu0 0.0
      %244 = vmatprep.subr.mxu0 0.0
      %245 = vmatpush2.msra.mxu0 0.0
      %246 = vmatprep.subr.mxu0 0.0
      %247 = vmatpush2.msra.mxu0 0.0
      %248 = vmatprep.subr.mxu0 0.0
      %249 = vmatpush2.msra.mxu0 0.0
      %250 = vmatprep.mubr.f32.mxu0 0.0
      %251 = vmatmul.mubr.f32.gmra.mxu0 %v180
      %v252 = vpop.f32.mrf.mxu0
      %v253 = vadd.f32 %v176, %v252
      %v254 = vpop.f32.mrf.mxu0
      %255 = vdwg.mxu0
      %v256 = vxor.u32 %v253, 2147483648
      %v257 = vmul.f32 %v256, 1.442695
      %v258 = vpow.pop %v257
      %v259 = vadd.f32 %v258, 1.0
      %v260 = vrcp.pop %v259
      %v261 = vmul.f32 1.0, %v260
      %vm262 = vcmask 25600
      %263 = vst.msk [vmem:[#allocation6] sm:$0x3] %vm262, %v261
    $region33: #{tpu_custom_call.1} parent=1 // pred_fallthru
      _
    // Predicated region
    $region34: #{tpu_custom_call.1} parent=1 // pred_check
      _
    $region35: #{tpu_custom_call.1} parent=1 // pred_check_branch
      %265 = sbr.rel (0) target = $region37
    $region36: #{tpu_custom_call.1} parent=1 // pred_region
      %s267 = ssub.s32 32, 32
      %268 = vsyncadd [#allocation5], %s267
      %s270 = sshll.u32 [#allocation6], 4
      %s271 = int_to_ptr.vmem [resolvable:$true] %s270
      %273 = dma.vmem_to_hbm [thread:$0]  %s271, 32, %s5, [#allocation5]
    $region37: #{tpu_custom_call.1} parent=1 // pred_fallthru
      _
    // Predicated region
    $region38: #{tpu_custom_call.1} parent=1 // pred_check
      _
    $region39: #{tpu_custom_call.1} parent=1 // pred_check_branch
      %275 = sbr.rel (0) target = $region41
    $region40: #{tpu_custom_call.1} parent=1 // pred_region
      %276 = dma.done [#allocation5], 32
    $region41: #{tpu_custom_call.1} parent=1 // pred_fallthru
      _
    %277 = vsyncpa [#allocation4], 1
    %278 = vsyncpa [#allocation5], 1

</llo_original>
